<compile_context>
chip_gen: v7x
topology: tpu7x:2x2x1
jax: 0.10.0
libtpu: 0.0.40
codegen_flags: <defaults>
</compile_context>

<pallas_src>
import functools

import jax
import jax.numpy as jnp
from jax.experimental import pallas as pl
from jax.experimental.pallas import tpu as pltpu

SUB = 8          # f32 sublanes per vreg
MIN_SPLIT = 256  # batches larger than this get >= 2 grid steps (megacore split)


def _round_up(x, m):
    return ((x + m - 1) // m) * m


# ---------------------------------------------------------------------------
# Kernels
# ---------------------------------------------------------------------------
def _critic_kernel_value(x_ref, w1_ref, b1_ref, w2_ref, b2_ref, w3_ref, b3_ref,
                         o_ref):
    """out_dim == 1: layer 3 is a VPU multiply + lane reduction (no N=1 matmul).
    Output is the narrow (TB, 1) value column."""
    x = x_ref[...].astype(w1_ref.dtype)
    h1 = jnp.tanh(
        jnp.dot(x, w1_ref[...], preferred_element_type=jnp.float32) + b1_ref[...])
    h2 = jnp.tanh(
        jnp.dot(h1.astype(w2_ref.dtype), w2_ref[...],
                preferred_element_type=jnp.float32) + b2_ref[...])
    v = jnp.sum(h2 * w3_ref[...], axis=-1, keepdims=True) + b3_ref[...]
    o_ref[...] = v.astype(o_ref.dtype)


def _critic_kernel_matmul(x_ref, w1_ref, b1_ref, w2_ref, b2_ref, w3_ref, b3_ref,
                          o_ref):
    """General out_dim path: third layer as a (narrow-N) matmul."""
    x = x_ref[...].astype(w1_ref.dtype)
    h1 = jnp.tanh(
        jnp.dot(x, w1_ref[...], preferred_element_type=jnp.float32) + b1_ref[...])
    h2 = jnp.tanh(
        jnp.dot(h1.astype(w2_ref.dtype), w2_ref[...],
                preferred_element_type=jnp.float32) + b2_ref[...])
    v = jnp.dot(h2.astype(w3_ref.dtype), w3_ref[...],
                preferred_element_type=jnp.float32) + b3_ref[...]
    o_ref[...] = v.astype(o_ref.dtype)


# ---------------------------------------------------------------------------
# One-time parameter preparation (hoisted out of the per-call forward)
# ---------------------------------------------------------------------------
def prepare_critic_params(params, use_bf16_matmul=False):
    """Transpose / cast / reshape the PyTorch-layout weights once.
    Returns (prep_dict, out_dim)."""
    mm_dtype = jnp.bfloat16 if use_bf16_matmul else jnp.float32
    out_dim = int(params["w3"].shape[0])
    prep = {
        "w1t": jnp.asarray(params["w1"]).T.astype(mm_dtype),              # (D, H)
        "b1": jnp.asarray(params["b1"], jnp.float32).reshape(1, -1),      # (1, H)
        "w2t": jnp.asarray(params["w2"]).T.astype(mm_dtype),              # (H, H)
        "b2": jnp.asarray(params["b2"], jnp.float32).reshape(1, -1),      # (1, H)
    }
    if out_dim == 1:
        # row vector for the VPU-reduce path (kept f32: it's VPU work, not MXU)
        prep["w3"] = jnp.asarray(params["w3"], jnp.float32).reshape(1, -1)  # (1, H)
        prep["b3"] = jnp.asarray(params["b3"], jnp.float32).reshape(1, 1)   # (1, 1)
    else:
        prep["w3"] = jnp.asarray(params["w3"]).T.astype(mm_dtype)           # (H, O)
        prep["b3"] = jnp.asarray(params["b3"], jnp.float32).reshape(1, -1)  # (1, O)
    return prep, out_dim


# ---------------------------------------------------------------------------
# Forward
# ---------------------------------------------------------------------------
@functools.partial(jax.jit, static_argnames=("out_dim", "tb_max"))
def critic_forward(x, prep, *, out_dim, tb_max=2048):
    """x: (B, input_dim) float32; prep from prepare_critic_params()."""
    B, D = x.shape

    # Batch tile: never round B up to a multiple of the tile (ragged last block
    # is fine; padded/garbage rows are row-independent, tanh-bounded and their
    # output writes are masked).  Batches > MIN_SPLIT get >= 2 grid steps so the
    # "parallel" axis can shard across the two TensorCores on v7x.
    if B <= MIN_SPLIT:
        tb = B                                             # single full-dim block
    else:
        tb = min(int(tb_max), _round_up(-(-B // 2), SUB))  # >= 2 steps, <= tb_max
        tb = max(tb, SUB)
    grid = (pl.cdiv(B, tb),)

    def resident(a):  # weights/biases: same block every step -> stay in VMEM
        return pl.BlockSpec(a.shape, lambda i: (0, 0))

    kernel = _critic_kernel_value if out_dim == 1 else _critic_kernel_matmul

    out = pl.pallas_call(
        kernel,
        out_shape=jax.ShapeDtypeStruct((B, out_dim), jnp.float32),
        grid=grid,
        in_specs=[
            pl.BlockSpec((tb, D), lambda i: (i, 0)),       # x tile, pipelined
            resident(prep["w1t"]), resident(prep["b1"]),
            resident(prep["w2t"]), resident(prep["b2"]),
            resident(prep["w3"]), resident(prep["b3"]),
        ],
        out_specs=pl.BlockSpec((tb, out_dim), lambda i: (i, 0)),
        compiler_params=pltpu.CompilerParams(
            dimension_semantics=("parallel",)),
    )(x, prep["w1t"], prep["b1"], prep["w2t"], prep["b2"],
      prep["w3"], prep["b3"])

    return out


# ---------------------------------------------------------------------------
# Parameter init (mirrors layer_init(..., 'orthogonal') semantics)
# ---------------------------------------------------------------------------
def _orthogonal(key, shape, gain):
    rows, cols = shape
    flat = jax.random.normal(key, (max(rows, cols), min(rows, cols)),
                             dtype=jnp.float32)
    q, r = jnp.linalg.qr(flat)
    q = q * jnp.sign(jnp.diag(r))[None, :]
    if rows < cols:
        q = q.T
    return gain * q[:rows, :cols]


def init_critic_params(input_dim, output_dim, hidden_size=64, seed=0):
    # TODO(synk): matches PyTorch's orthogonal-init *distribution*, not the exact
    # torch.manual_seed(123) draw (RNG streams differ between frameworks).
    key = jax.random.PRNGKey(seed)
    k1, k2, k3 = jax.random.split(key, 3)
    tanh_gain = 5.0 / 3.0   # nn.init.calculate_gain('tanh')
    lin_gain = 1.0          # nn.init.calculate_gain('linear')
    return {
        "w1": _orthogonal(k1, (hidden_size, input_dim), tanh_gain),
        "b1": jnp.zeros((hidden_size,), jnp.float32),
        "w2": _orthogonal(k2, (hidden_size, hidden_size), tanh_gain),
        "b2": jnp.zeros((hidden_size,), jnp.float32),
        "w3": _orthogonal(k3, (output_dim, hidden_size), lin_gain),
        "b3": jnp.zeros((output_dim,), jnp.float32),
    }


def _reference(x, p):
    h = jnp.tanh(x @ p["w1"].T + p["b1"])
    h = jnp.tanh(h @ p["w2"].T + p["b2"])
    return h @ p["w3"].T + p["b3"]


if __name__ == "__main__":
    # main case: Critic defaults (out_dim=1 -> VPU-reduce path, narrow output)
    input_dim, output_dim, hidden_size = 16, 1, 64
    batch = 8

    params = init_critic_params(input_dim, output_dim, hidden_size, seed=0)
    x = jax.random.normal(jax.random.PRNGKey(0), (batch, input_dim),
                          dtype=jnp.float32)

    prep, od = prepare_critic_params(params)                  # one-time prep
    v = jax.block_until_ready(critic_forward(x, prep, out_dim=od))
    v_ref = _reference(x, params)
    assert v.shape == (batch, output_dim)
    assert jnp.allclose(v, v_ref, atol=1e-5), "mismatch vs reference (out_dim=1)"

    # secondary case: out_dim > 1 exercises the narrow-matmul path
    params3 = init_critic_params(input_dim, 3, hidden_size, seed=1)
    prep3, od3 = prepare_critic_params(params3)
    v3 = jax.block_until_ready(critic_forward(x, prep3, out_dim=od3))
    assert v3.shape == (batch, 3)
    assert jnp.allclose(v3, _reference(x, params3), atol=1e-5), \
        "mismatch vs reference (out_dim=3)"

    # large batch, f32: multi-step "parallel" grid with a ragged last block
    big_b = 3000
    xb = jax.random.normal(jax.random.PRNGKey(1), (big_b, input_dim),
                           dtype=jnp.float32)
    vb = jax.block_until_ready(critic_forward(xb, prep, out_dim=od))
    vb_ref = _reference(xb, params)
    assert vb.shape == (big_b, 1)
    assert jnp.allclose(vb, vb_ref, atol=1e-4, rtol=1e-4), \
        "mismatch vs reference (large batch, f32)"

    # large batch, bf16 weights (in-kernel x cast, f32 accumulation/tanh/bias);
    # loose tolerance is expected for bf16 operands.
    prep_bf16, _ = prepare_critic_params(params, use_bf16_matmul=True)
    vb16 = jax.block_until_ready(critic_forward(xb, prep_bf16, out_dim=od))
    assert vb16.shape == (big_b, 1)
    assert jnp.allclose(vb16, vb_ref, atol=0.15, rtol=0.0), \
        "mismatch vs reference (large batch, bf16)"

    print("KERNEL_OK")
</pallas_src>

<mosaic_0001>
module attributes {stable_mosaic.version = 11 : i64} {
  func.func @_critic_kernel_value(%arg0: i32, %arg1: memref<8x16xf32, #tpu.memory_space<vmem>>, %arg2: memref<16x64xf32, #tpu.memory_space<vmem>>, %arg3: memref<1x64xf32, #tpu.memory_space<vmem>>, %arg4: memref<64x64xf32, #tpu.memory_space<vmem>>, %arg5: memref<1x64xf32, #tpu.memory_space<vmem>>, %arg6: memref<1x64xf32, #tpu.memory_space<vmem>>, %arg7: memref<1x1xf32, #tpu.memory_space<vmem>>, %arg8: memref<8x1xf32, #tpu.memory_space<vmem>>) attributes {dimension_semantics = [#tpu.dimension_semantics<parallel>], iteration_bounds = array<i64: 1>, scalar_prefetch = 0 : i64, scratch_operands = 0 : i64, tpu.core_type = #tpu.core_type<tc>, window_params = [{transform_indices = @transform_0, window_bounds = array<i64: 8, 16>}, {pipeline_mode = #tpu.pipeline_mode<synchronous>, transform_indices = @transform_1, window_bounds = array<i64: 16, 64>}, {pipeline_mode = #tpu.pipeline_mode<synchronous>, transform_indices = @transform_2, window_bounds = array<i64: 1, 64>}, {pipeline_mode = #tpu.pipeline_mode<synchronous>, transform_indices = @transform_3, window_bounds = array<i64: 64, 64>}, {pipeline_mode = #tpu.pipeline_mode<synchronous>, transform_indices = @transform_4, window_bounds = array<i64: 1, 64>}, {pipeline_mode = #tpu.pipeline_mode<synchronous>, transform_indices = @transform_5, window_bounds = array<i64: 1, 64>}, {pipeline_mode = #tpu.pipeline_mode<synchronous>, transform_indices = @transform_6, window_bounds = array<i64: 1, 1>}, {transform_indices = @transform_7, window_bounds = array<i64: 8, 1>}]} {
    %c0 = arith.constant 0 : index
    %c0_0 = arith.constant 0 : index
    %0 = vector.load %arg1[%c0, %c0_0] : memref<8x16xf32, #tpu.memory_space<vmem>>, vector<8x16xf32>
    %c0_1 = arith.constant 0 : index
    %c0_2 = arith.constant 0 : index
    %1 = vector.load %arg2[%c0_1, %c0_2] : memref<16x64xf32, #tpu.memory_space<vmem>>, vector<16x64xf32>
    %cst = arith.constant dense<0.000000e+00> : vector<8x64xf32>
    %2 = tpu.matmul %0, %1, %cst {dimension_numbers = #tpu.dot_dimension_numbers<[1], [0], [0], [1], [0, 0, 1, 1], [], []>} : vector<8x16xf32>, vector<16x64xf32>, vector<8x64xf32> -> vector<8x64xf32>
    %c0_3 = arith.constant 0 : index
    %c0_4 = arith.constant 0 : index
    %3 = vector.load %arg3[%c0_3, %c0_4] : memref<1x64xf32, #tpu.memory_space<vmem>>, vector<1x64xf32>
    %4 = vector.broadcast %3 : vector<1x64xf32> to vector<8x64xf32>
    %5 = arith.addf %2, %4 : vector<8x64xf32>
    %6 = math.tanh %5 : vector<8x64xf32>
    %c0_5 = arith.constant 0 : index
    %c0_6 = arith.constant 0 : index
    %7 = vector.load %arg4[%c0_5, %c0_6] : memref<64x64xf32, #tpu.memory_space<vmem>>, vector<64x64xf32>
    %cst_7 = arith.constant dense<0.000000e+00> : vector<8x64xf32>
    %8 = tpu.matmul %6, %7, %cst_7 {dimension_numbers = #tpu.dot_dimension_numbers<[1], [0], [0], [1], [0, 0, 1, 1], [], []>} : vector<8x64xf32>, vector<64x64xf32>, vector<8x64xf32> -> vector<8x64xf32>
    %c0_8 = arith.constant 0 : index
    %c0_9 = arith.constant 0 : index
    %9 = vector.load %arg5[%c0_8, %c0_9] : memref<1x64xf32, #tpu.memory_space<vmem>>, vector<1x64xf32>
    %10 = vector.broadcast %9 : vector<1x64xf32> to vector<8x64xf32>
    %11 = arith.addf %8, %10 : vector<8x64xf32>
    %12 = math.tanh %11 : vector<8x64xf32>
    %c0_10 = arith.constant 0 : index
    %c0_11 = arith.constant 0 : index
    %13 = vector.load %arg6[%c0_10, %c0_11] : memref<1x64xf32, #tpu.memory_space<vmem>>, vector<1x64xf32>
    %14 = vector.broadcast %13 : vector<1x64xf32> to vector<8x64xf32>
    %15 = arith.mulf %12, %14 : vector<8x64xf32>
    %cst_12 = arith.constant dense<0.000000e+00> : vector<8xf32>
    %16 = vector.multi_reduction <add>, %15, %cst_12 [1] : vector<8x64xf32> to vector<8xf32>
    %17 = vector.shape_cast %16 : vector<8xf32> to vector<8x1xf32>
    %c0_13 = arith.constant 0 : index
    %c0_14 = arith.constant 0 : index
    %18 = vector.load %arg7[%c0_13, %c0_14] : memref<1x1xf32, #tpu.memory_space<vmem>>, vector<1x1xf32>
    %19 = vector.broadcast %18 : vector<1x1xf32> to vector<8x1xf32>
    %20 = arith.addf %17, %19 : vector<8x1xf32>
    %c0_15 = arith.constant 0 : index
    %c0_16 = arith.constant 0 : index
    %21 = vector.load %arg8[%c0_15, %c0_16] : memref<8x1xf32, #tpu.memory_space<vmem>>, vector<8x1xf32>
    tpu.vector_store %arg8[%c0_15, %c0_16], %20 {strides = array<i32>} : memref<8x1xf32, #tpu.memory_space<vmem>>, vector<8x1xf32>,
    return
  }
  func.func @transform_0(%arg0: i32) -> (i32, i32) {
    %c0_i32 = arith.constant 0 : i32
    %c0_i32_0 = arith.constant 0 : i32
    return %arg0, %c0_i32 : i32, i32
  }
  func.func @transform_1(%arg0: i32) -> (i32, i32) {
    %c0_i32 = arith.constant 0 : i32
    %c0_i32_0 = arith.constant 0 : i32
    %c0_i32_1 = arith.constant 0 : i32
    return %c0_i32, %c0_i32_0 : i32, i32
  }
  func.func @transform_2(%arg0: i32) -> (i32, i32) {
    %c0_i32 = arith.constant 0 : i32
    %c0_i32_0 = arith.constant 0 : i32
    %c0_i32_1 = arith.constant 0 : i32
    return %c0_i32, %c0_i32_0 : i32, i32
  }
  func.func @transform_3(%arg0: i32) -> (i32, i32) {
    %c0_i32 = arith.constant 0 : i32
    %c0_i32_0 = arith.constant 0 : i32
    %c0_i32_1 = arith.constant 0 : i32
    return %c0_i32, %c0_i32_0 : i32, i32
  }
  func.func @transform_4(%arg0: i32) -> (i32, i32) {
    %c0_i32 = arith.constant 0 : i32
    %c0_i32_0 = arith.constant 0 : i32
    %c0_i32_1 = arith.constant 0 : i32
    return %c0_i32, %c0_i32_0 : i32, i32
  }
  func.func @transform_5(%arg0: i32) -> (i32, i32) {
    %c0_i32 = arith.constant 0 : i32
    %c0_i32_0 = arith.constant 0 : i32
    %c0_i32_1 = arith.constant 0 : i32
    return %c0_i32, %c0_i32_0 : i32, i32
  }
  func.func @transform_6(%arg0: i32) -> (i32, i32) {
    %c0_i32 = arith.constant 0 : i32
    %c0_i32_0 = arith.constant 0 : i32
    %c0_i32_1 = arith.constant 0 : i32
    return %c0_i32, %c0_i32_0 : i32, i32
  }
  func.func @transform_7(%arg0: i32) -> (i32, i32) {
    %c0_i32 = arith.constant 0 : i32
    %c0_i32_0 = arith.constant 0 : i32
    return %arg0, %c0_i32 : i32, i32
  }
}

</mosaic_0001>

<llo_original>
// kernel: critic_forward.1
$region0: #{critic_forward.1}
  #allocation0 [shape = 'u32[]', space=smem, size = 0x4, offset = 0x4, fixed_abs, tag = 'smem constant byte address 0x4 - core index']
  #allocation1 [shape = 'u32[144,128]{1,0:T(1,128)}', space=vmem, size = 0x12000, scoped, tag = 'internal scratch']
  #allocation2 [shape = 'f32[1,1]{1,0:T(1,128)S(1)}', space=vmem, size = 0x200, scoped, tag = 'scoped memory for critic_forward.1']
  %s0 = inlined_call_operand.hbm [shape: f32[8,16], index: 0, kind: input, shape index: {}]
  %s1 = inlined_call_operand.hbm [shape: f32[16,64], index: 1, kind: input, shape index: {}]
  %s2 = inlined_call_operand.vmem [shape: f32[1,64], index: 2, kind: input, shape index: {}]
  %s3 = inlined_call_operand.hbm [shape: f32[64,64], index: 3, kind: input, shape index: {}]
  %s4 = inlined_call_operand.vmem [shape: f32[1,64], index: 4, kind: input, shape index: {}]
  %s5 = inlined_call_operand.vmem [shape: f32[1,64], index: 5, kind: input, shape index: {}]
  %s6 = inlined_call_operand.<no memory space> [shape: f32[1,1], index: 6, kind: input, shape index: {}]
  %s7 = inlined_call_operand.vmem [shape: f32[8,1], index: 7, kind: output, shape index: {}]
  %s8 = sld [smem:[#allocation0]]
  $region50: #{critic_forward.1} parent=0
    _
  %s10 = ssub.s32 1, %s8
  %s11 = scalar_select 0, %s10, %s8
  %v12 = vstv %s6
  %13 = vst [vmem:[#allocation2] sm:$0x1] %v12
  $region1: #{critic_forward.1} parent=0
    #allocation3 [shape = 'u8[4096]{0}', space=vmem, size = 0x1000, scoped, tag = 'input window, operand 0, single buffered']
    #allocation4 [shape = 's32[1]{0}', space=sflag, size = 0x4, scoped, tag = 'scoped memory for critic_forward.1']
    #allocation5 [shape = 'u8[8192]{0}', space=vmem, size = 0x2000, scoped, tag = 'input window, operand 1, single buffered']
    #allocation6 [shape = 's32[1]{0}', space=sflag, size = 0x4, scoped, tag = 'scoped memory for critic_forward.1']
    #allocation7 [shape = 'u8[32768]{0}', space=vmem, size = 0x8000, scoped, tag = 'input window, operand 3, single buffered']
    %14 = vsyncpa [#allocation4], 0
    %15 = vsyncpa [#allocation6], 0
    // Predicated region
    $region2: #{critic_forward.1} parent=1 // pred_check
      _
    $region3: #{critic_forward.1} parent=1 // pred_check_branch
      %17 = sbr.rel (0) target = $region5
    $region4: #{critic_forward.1} parent=1 // pred_region
      %s19 = ssub.s32 128, 128
      %20 = vsyncadd [#allocation4], %s19
      %s22 = sshll.u32 [#allocation3], 4
      %s23 = int_to_ptr.vmem [resolvable:$true] %s22
      %25 = dma.hbm_to_vmem [thread:$0]  %s0, 128, %s23, [#allocation4]
    $region5: #{critic_forward.1} parent=1 // pred_fallthru
      _
    // Predicated region
    $region6: #{critic_forward.1} parent=1 // pred_check
      _
    $region7: #{critic_forward.1} parent=1 // pred_check_branch
      %27 = sbr.rel (0) target = $region9
    $region8: #{critic_forward.1} parent=1 // pred_region
      %s29 = ssub.s32 256, 256
      %30 = vsyncadd [#allocation6], %s29
      %s31 = sshll.u32 [#allocation5], 4
      %s32 = int_to_ptr.vmem [resolvable:$true] %s31
      %37 = dma.hbm_to_vmem [thread:$0]  %s1, 256, %s32, [#allocation6], 128, 128, 8
    $region9: #{critic_forward.1} parent=1 // pred_fallthru
      _
    // Predicated region
    $region10: #{critic_forward.1} parent=1 // pred_check
      _
    $region11: #{critic_forward.1} parent=1 // pred_check_branch
      %39 = sbr.rel (0) target = $region13
    $region12: #{critic_forward.1} parent=1 // pred_region
      _
    $region13: #{critic_forward.1} parent=1 // pred_fallthru
      _
    // Predicated region
    $region14: #{critic_forward.1} parent=1 // pred_check
      _
    $region15: #{critic_forward.1} parent=1 // pred_check_branch
      %41 = sbr.rel (0) target = $region17
    $region16: #{critic_forward.1} parent=1 // pred_region
      %s43 = ssub.s32 1024, 1024
      %44 = vsyncadd [#allocation6], %s43
      %s45 = sshll.u32 [#allocation7], 4
      %s46 = int_to_ptr.vmem [resolvable:$true] %s45
      %51 = dma.hbm_to_vmem [thread:$0]  %s3, 1024, %s46, [#allocation6], 128, 128, 8
    $region17: #{critic_forward.1} parent=1 // pred_fallthru
      _
    // Predicated region
    $region18: #{critic_forward.1} parent=1 // pred_check
      _
    $region19: #{critic_forward.1} parent=1 // pred_check_branch
      %53 = sbr.rel (0) target = $region21
    $region20: #{critic_forward.1} parent=1 // pred_region
      _
    $region21: #{critic_forward.1} parent=1 // pred_fallthru
      _
    // Predicated region
    $region22: #{critic_forward.1} parent=1 // pred_check
      _
    $region23: #{critic_forward.1} parent=1 // pred_check_branch
      %55 = sbr.rel (0) target = $region25
    $region24: #{critic_forward.1} parent=1 // pred_region
      _
    $region25: #{critic_forward.1} parent=1 // pred_fallthru
      _
    // Predicated region
    $region26: #{critic_forward.1} parent=1 // pred_check
      _
    $region27: #{critic_forward.1} parent=1 // pred_check_branch
      %57 = sbr.rel (0) target = $region29
    $region28: #{critic_forward.1} parent=1 // pred_region
      _
    $region29: #{critic_forward.1} parent=1 // pred_fallthru
      _
    // Predicated region
    $region30: #{critic_forward.1} parent=1 // pred_check
      _
    $region31: #{critic_forward.1} parent=1 // pred_check_branch
      %59 = sbr.rel (0) target = $region33
    $region32: #{critic_forward.1} parent=1 // pred_region
      %60 = dma.done [#allocation4], 128
    $region33: #{critic_forward.1} parent=1 // pred_fallthru
      _
    // Predicated region
    $region34: #{critic_forward.1} parent=1 // pred_check
      _
    $region35: #{critic_forward.1} parent=1 // pred_check_branch
      %62 = sbr.rel (0) target = $region37
    $region36: #{critic_forward.1} parent=1 // pred_region
      %63 = dma.done [#allocation6], 256
    $region37: #{critic_forward.1} parent=1 // pred_fallthru
      _
    // Predicated region
    $region38: #{critic_forward.1} parent=1 // pred_check
      _
    $region39: #{critic_forward.1} parent=1 // pred_check_branch
      %65 = sbr.rel (0) target = $region41
    $region40: #{critic_forward.1} parent=1 // pred_region
      %66 = dma.done [#allocation6], 1024
    $region41: #{critic_forward.1} parent=1 // pred_fallthru
      _
    %v67 = vld [vmem:[#allocation3] sm:$0xff]
    %v68 = vld [vmem:[#allocation5] sm:$0xff]
    %v69 = vld [vmem:[#allocation5 + $0x8] sm:$0xff]
    %v70 = vld [vmem:[%s2] sm:$0x1]
    %v72 = vlaneseq
    %v73 = vshrl.u32 %v72, 7
    %v74 = vsub.s32 0, %v73
    %v75 = vrot.slane %v70, %v74
    %vm77 = vcmask 130048
    %v79 = vsel %vm77, %v67, 0
    %81 = vmatprep.subr.mxu0 0.0
    %82 = vmatpush1.msra.mxu0 %v68
    %83 = vmatprep.subr.mxu0 0.0
    %84 = vmatpush1.msra.mxu0 %v69
    %85 = vmatprep.subr.mxu0 0.0
    %86 = vmatpush1.msra.mxu0 0.0
    %87 = vmatprep.subr.mxu0 0.0
    %88 = vmatpush1.msra.mxu0 0.0
    %89 = vmatprep.subr.mxu0 0.0
    %90 = vmatpush1.msra.mxu0 0.0
    %91 = vmatprep.subr.mxu0 0.0
    %92 = vmatpush1.msra.mxu0 0.0
    %93 = vmatprep.subr.mxu0 0.0
    %94 = vmatpush1.msra.mxu0 0.0
    %95 = vmatprep.subr.mxu0 0.0
    %96 = vmatpush1.msra.mxu0 0.0
    %97 = vmatprep.subr.mxu0 0.0
    %98 = vmatpush1.msra.mxu0 0.0
    %99 = vmatprep.subr.mxu0 0.0
    %100 = vmatpush1.msra.mxu0 0.0
    %101 = vmatprep.subr.mxu0 0.0
    %102 = vmatpush1.msra.mxu0 0.0
    %103 = vmatprep.subr.mxu0 0.0
    %104 = vmatpush1.msra.mxu0 0.0
    %105 = vmatprep.subr.mxu0 0.0
    %106 = vmatpush1.msra.mxu0 0.0
    %107 = vmatprep.subr.mxu0 0.0
    %108 = vmatpush1.msra.mxu0 0.0
    %109 = vmatprep.subr.mxu0 0.0
    %110 = vmatpush1.msra.mxu0 0.0
    %111 = vmatprep.subr.mxu0 0.0
    %112 = vmatpush1.msra.mxu0 0.0
    %113 = vmatprep.subr.mxu0 0.0
    %114 = vmatpush1.msra.mxu0 0.0
    %115 = vmatprep.subr.mxu0 0.0
    %116 = vmatpush1.msra.mxu0 0.0
    %117 = vmatprep.subr.mxu0 0.0
    %118 = vmatpush1.msra.mxu0 0.0
    %119 = vmatprep.subr.mxu0 0.0
    %120 = vmatpush1.msra.mxu0 0.0
    %121 = vmatprep.subr.mxu0 0.0
    %122 = vmatpush1.msra.mxu0 0.0
    %123 = vmatprep.subr.mxu0 0.0
    %124 = vmatpush1.msra.mxu0 0.0
    %125 = vmatprep.subr.mxu0 0.0
    %126 = vmatpush1.msra.mxu0 0.0
    %127 = vmatprep.subr.mxu0 0.0
    %128 = vmatpush1.msra.mxu0 0.0
    %129 = vmatprep.subr.mxu0 0.0
    %130 = vmatpush1.msra.mxu0 0.0
    %131 = vmatprep.subr.mxu0 0.0
    %132 = vmatpush1.msra.mxu0 0.0
    %133 = vmatprep.subr.mxu0 0.0
    %134 = vmatpush1.msra.mxu0 0.0
    %135 = vmatprep.subr.mxu0 0.0
    %136 = vmatpush1.msra.mxu0 0.0
    %137 = vmatprep.subr.mxu0 0.0
    %138 = vmatpush1.msra.mxu0 0.0
    %139 = vmatprep.subr.mxu0 0.0
    %140 = vmatpush1.msra.mxu0 0.0
    %141 = vmatprep.subr.mxu0 0.0
    %142 = vmatpush1.msra.mxu0 0.0
    %143 = vmatprep.subr.mxu0 0.0
    %144 = vmatpush1.msra.mxu0 0.0
    %145 = vmatprep.mubr.f32.mxu0 0.0
    %146 = vmatmul.mubr.f32.gmra.mrb[0].mxu0 %v79
    %v147 = vpop.f32.mrb[0].mxu0
    %v148 = vadd.f32 %v75, %v147
    %v149 = vpop.f32.mrb[0].mxu0
    %150 = vdwg.mxu0
    %v151 = vtanh.pop %v148
    %v152 = vld [vmem:[#allocation7] sm:$0xff]
    %v153 = vld [vmem:[#allocation7 + $0x8] sm:$0xff]
    %v154 = vld [vmem:[#allocation7 + $0x10] sm:$0xff]
    %v155 = vld [vmem:[#allocation7 + $0x18] sm:$0xff]
    %v156 = vld [vmem:[#allocation7 + $0x20] sm:$0xff]
    %v157 = vld [vmem:[#allocation7 + $0x28] sm:$0xff]
    %v158 = vld [vmem:[#allocation7 + $0x30] sm:$0xff]
    %v159 = vld [vmem:[#allocation7 + $0x38] sm:$0xff]
    %v160 = vld [vmem:[%s4] sm:$0x1]
    %v162 = vlaneseq
    %v163 = vshrl.u32 %v162, 7
    %v164 = vsub.s32 0, %v163
    %v165 = vrot.slane %v160, %v164
    %vm167 = vcmask 523264
    %v169 = vsel %vm167, %v151, 0
    %171 = vmatprep.subr.mxu0 0.0
    %172 = vmatpush1.msra.mxu0 %v152
    %173 = vmatprep.subr.mxu0 0.0
    %174 = vmatpush1.msra.mxu0 %v153
    %175 = vmatprep.subr.mxu0 0.0
    %176 = vmatpush1.msra.mxu0 %v154
    %177 = vmatprep.subr.mxu0 0.0
    %178 = vmatpush1.msra.mxu0 %v155
    %179 = vmatprep.subr.mxu0 0.0
    %180 = vmatpush1.msra.mxu0 %v156
    %181 = vmatprep.subr.mxu0 0.0
    %182 = vmatpush1.msra.mxu0 %v157
    %183 = vmatprep.subr.mxu0 0.0
    %184 = vmatpush1.msra.mxu0 %v158
    %185 = vmatprep.subr.mxu0 0.0
    %186 = vmatpush1.msra.mxu0 %v159
    %187 = vmatprep.subr.mxu0 0.0
    %188 = vmatpush1.msra.mxu0 0.0
    %189 = vmatprep.subr.mxu0 0.0
    %190 = vmatpush1.msra.mxu0 0.0
    %191 = vmatprep.subr.mxu0 0.0
    %192 = vmatpush1.msra.mxu0 0.0
    %193 = vmatprep.subr.mxu0 0.0
    %194 = vmatpush1.msra.mxu0 0.0
    %195 = vmatprep.subr.mxu0 0.0
    %196 = vmatpush1.msra.mxu0 0.0
    %197 = vmatprep.subr.mxu0 0.0
    %198 = vmatpush1.msra.mxu0 0.0
    %199 = vmatprep.subr.mxu0 0.0
    %200 = vmatpush1.msra.mxu0 0.0
    %201 = vmatprep.subr.mxu0 0.0
    %202 = vmatpush1.msra.mxu0 0.0
    %203 = vmatprep.subr.mxu0 0.0
    %204 = vmatpush1.msra.mxu0 0.0
    %205 = vmatprep.subr.mxu0 0.0
    %206 = vmatpush1.msra.mxu0 0.0
    %207 = vmatprep.subr.mxu0 0.0
    %208 = vmatpush1.msra.mxu0 0.0
    %209 = vmatprep.subr.mxu0 0.0
    %210 = vmatpush1.msra.mxu0 0.0
    %211 = vmatprep.subr.mxu0 0.0
    %212 = vmatpush1.msra.mxu0 0.0
    %213 = vmatprep.subr.mxu0 0.0
    %214 = vmatpush1.msra.mxu0 0.0
    %215 = vmatprep.subr.mxu0 0.0
    %216 = vmatpush1.msra.mxu0 0.0
    %217 = vmatprep.subr.mxu0 0.0
    %218 = vmatpush1.msra.mxu0 0.0
    %219 = vmatprep.subr.mxu0 0.0
    %220 = vmatpush1.msra.mxu0 0.0
    %221 = vmatprep.subr.mxu0 0.0
    %222 = vmatpush1.msra.mxu0 0.0
    %223 = vmatprep.subr.mxu0 0.0
    %224 = vmatpush1.msra.mxu0 0.0
    %225 = vmatprep.subr.mxu0 0.0
    %226 = vmatpush1.msra.mxu0 0.0
    %227 = vmatprep.subr.mxu0 0.0
    %228 = vmatpush1.msra.mxu0 0.0
    %229 = vmatprep.subr.mxu0 0.0
    %230 = vmatpush1.msra.mxu0 0.0
    %231 = vmatprep.subr.mxu0 0.0
    %232 = vmatpush1.msra.mxu0 0.0
    %233 = vmatprep.subr.mxu0 0.0
    %234 = vmatpush1.msra.mxu0 0.0
    %235 = vmatprep.mubr.f32.mxu0 0.0
    %236 = vmatmul.mubr.f32.gmra.mrb[0].mxu0 %v169
    %v237 = vpop.f32.mrb[0].mxu0
    %v238 = vadd.f32 %v165, %v237
    %v239 = vpop.f32.mrb[0].mxu0
    %240 = vdwg.mxu0
    %v241 = vtanh.pop %v238
    %v242 = vld [vmem:[%s5] sm:$0x1]
    %v244 = vlaneseq
    %v245 = vshrl.u32 %v244, 7
    %v246 = vsub.s32 0, %v245
    %v247 = vrot.slane %v242, %v246
    %v249 = vmul.f32 %v241, %v247
    %v250 = vsel %vm167, %v249, 0.0
    %251 = vadd.xlane.f32.xlu0 %v250
    %v252 = vpop.xlane.xlu0 %251
    %v253 = vld [vmem:[#allocation2] sm:$0x1]
    %v255 = vlaneseq
    %v256 = vshrl.u32 %v255, 7
    %v257 = vsub.s32 0, %v256
    %v258 = vrot.slane %v253, %v257
    %v260 = vadd.f32 %v252, %v258
    %vm261 = vcmask 7168
    %262 = vst.msk [vmem:[%s7] sm:$0xff] %vm261, %v260
    // Predicated region
    $region42: #{critic_forward.1} parent=1 // pred_check
      _
    $region43: #{critic_forward.1} parent=1 // pred_check_branch
      %264 = sbr.rel (0) target = $region45
    $region44: #{critic_forward.1} parent=1 // pred_region
      _
    $region45: #{critic_forward.1} parent=1 // pred_fallthru
      _
    // Predicated region
    $region46: #{critic_forward.1} parent=1 // pred_check
      _
    $region47: #{critic_forward.1} parent=1 // pred_check_branch
      %266 = sbr.rel (0) target = $region49
    $region48: #{critic_forward.1} parent=1 // pred_region
      _
    $region49: #{critic_forward.1} parent=1 // pred_fallthru
      _
    %267 = vsyncpa [#allocation4], 1
    %268 = vsyncpa [#allocation6], 1

</llo_original>
